<compile_context>
chip_gen: v7x
topology: tpu7x:2x2x1
jax: 0.10.0
libtpu: 0.0.40
codegen_flags: <defaults>
</compile_context>

<pallas_src>
import jax
import jax.numpy as jnp
from jax.experimental import pallas as pl
from jax.experimental.pallas import tpu as pltpu

_DEFAULT_TM = 512  # rows per grid step; ~85%+ of HBM roofline per measured data


def _qa_head_kernel(x_ref, w_ref, b_ref, start_ref, end_ref):
    # x_ref: [tm, H] (native dtype)   w_ref: [H, 2] (same dtype as x)
    # b_ref: [1, 2] f32               start_ref / end_ref: [tm, 1] f32
    logits = jnp.dot(x_ref[...], w_ref[...],
                     preferred_element_type=jnp.float32)      # [tm, 2], f32 acc
    logits = logits + b_ref[...]                              # broadcast bias
    start_ref[...] = logits[:, 0:1]
    end_ref[...] = logits[:, 1:2]


def prepare_qa_params(w_qa, b_qa, activation_dtype=jnp.float32):
    """One-time parameter prep (do this at init, NOT per forward call).

    w_qa: [2, H] (PyTorch out_features x in_features), b_qa: [2].
    Returns (w_hd [H, 2] in the activation dtype, b_row [1, 2] f32).
    """
    w_hd = jnp.asarray(w_qa).T.astype(activation_dtype)
    b_row = jnp.asarray(b_qa, jnp.float32).reshape(1, 2)
    return w_hd, b_row


def linear_qa_head_forward(sequence_output, w_hd, b_row, *, tm=None):
    """QA branch of LinearQAHead.forward (eval mode, no aux_targets).

    Args:
      sequence_output: [B, S, H] activations (f32 or bf16) — distilbert_output[0].
      w_hd: [H, 2] prepared fc_qa weight (see prepare_qa_params).
      b_row: [1, 2] f32 prepared fc_qa bias.
    Returns:
      (start_logits, end_logits), each [B, S] float32.
    """
    B, S, H = sequence_output.shape
    M = B * S
    x = sequence_output.reshape(M, H)

    if tm is None:
        # Full extent for small M (single step is fine there); bounded tile
        # otherwise so the grid has many steps (pipelining + v7x megacore) and
        # per-tile VMEM stays tiny even at the v7x 32 MiB scoped default.
        tm = M if M <= _DEFAULT_TM else _DEFAULT_TM
    grid_m = pl.cdiv(M, tm)  # ragged last tile handled by Pallas OOB masking

    itemsize = jnp.dtype(x.dtype).itemsize
    cost = pl.CostEstimate(
        flops=2 * M * H * 2,
        transcendentals=0,
        bytes_accessed=M * H * itemsize + H * 2 * itemsize + 2 * M * 4,
    )

    out_start, out_end = pl.pallas_call(
        _qa_head_kernel,
        out_shape=(
            jax.ShapeDtypeStruct((M, 1), jnp.float32),
            jax.ShapeDtypeStruct((M, 1), jnp.float32),
        ),
        grid_spec=pltpu.PrefetchScalarGridSpec(
            num_scalar_prefetch=0,
            grid=(grid_m,),
            in_specs=[
                pl.BlockSpec((tm, H), lambda i: (i, 0)),   # streamed activations
                pl.BlockSpec((H, 2), lambda i: (0, 0)),    # weight, VMEM-resident
                pl.BlockSpec((1, 2), lambda i: (0, 0)),    # bias, VMEM-resident
            ],
            out_specs=[
                pl.BlockSpec((tm, 1), lambda i: (i, 0)),
                pl.BlockSpec((tm, 1), lambda i: (i, 0)),
            ],
        ),
        compiler_params=pltpu.CompilerParams(
            dimension_semantics=("parallel",),
        ),
        cost_estimate=cost,
    )(x, w_hd, b_row)

    start_logits = out_start.reshape(B, S)
    end_logits = out_end.reshape(B, S)
    return start_logits, end_logits


def init_params(key, in_size, n_labels=2):
    """Deterministic init mirroring nn.Linear + xavier_uniform_ on the weight."""
    kw, kb = jax.random.split(key)
    a = (6.0 / (in_size + n_labels)) ** 0.5  # xavier_uniform_
    w = jax.random.uniform(kw, (n_labels, in_size), jnp.float32, -a, a)
    bb = 1.0 / (in_size ** 0.5)              # PyTorch Linear default bias init
    b = jax.random.uniform(kb, (n_labels,), jnp.float32, -bb, bb)
    return w, b


if __name__ == "__main__":
    key = jax.random.PRNGKey(0)
    k_x, k_p = jax.random.split(key)

    B, S, H = 2, 8, 32  # batch, seq, hidden (in_size)
    sequence_output = jax.random.normal(k_x, (B, S, H), jnp.float32)
    w_qa, b_qa = init_params(k_p, H, n_labels=2)

    # One-time parameter prep (outside the per-call path).
    w_hd, b_row = prepare_qa_params(w_qa, b_qa, activation_dtype=sequence_output.dtype)

    start_logits, end_logits = linear_qa_head_forward(sequence_output, w_hd, b_row)
    jax.block_until_ready((start_logits, end_logits))

    # Sanity check against a plain-JAX reference of the same math.
    ref = sequence_output.reshape(B * S, H) @ w_qa.T + b_qa
    ref_start = ref[:, 0].reshape(B, S)
    ref_end = ref[:, 1].reshape(B, S)
    assert start_logits.shape == (B, S) and end_logits.shape == (B, S)
    assert jnp.allclose(start_logits, ref_start, atol=1e-5, rtol=1e-5)
    assert jnp.allclose(end_logits, ref_end, atol=1e-5, rtol=1e-5)

    # TODO(synk): train-mode qa_dropout (RNG) and the highway/multitask/adversarial
    # branches (not constructed under default flags) are not implemented.
    print("KERNEL_OK")
</pallas_src>

<mosaic_0001>
module attributes {stable_mosaic.version = 11 : i64} {
  func.func @_qa_head_kernel(%arg0: i32, %arg1: memref<16x32xf32, #tpu.memory_space<vmem>>, %arg2: memref<32x2xf32, #tpu.memory_space<vmem>>, %arg3: memref<1x2xf32, #tpu.memory_space<vmem>>, %arg4: memref<16x1xf32, #tpu.memory_space<vmem>>, %arg5: memref<16x1xf32, #tpu.memory_space<vmem>>) attributes {dimension_semantics = [#tpu.dimension_semantics<parallel>], iteration_bounds = array<i64: 1>, scalar_prefetch = 0 : i64, scratch_operands = 0 : i64, tpu.core_type = #tpu.core_type<tc>, window_params = [{transform_indices = @transform_0, window_bounds = array<i64: 16, 32>}, {pipeline_mode = #tpu.pipeline_mode<synchronous>, transform_indices = @transform_1, window_bounds = array<i64: 32, 2>}, {pipeline_mode = #tpu.pipeline_mode<synchronous>, transform_indices = @transform_2, window_bounds = array<i64: 1, 2>}, {transform_indices = @transform_3, window_bounds = array<i64: 16, 1>}, {transform_indices = @transform_4, window_bounds = array<i64: 16, 1>}]} {
    %c0 = arith.constant 0 : index
    %c0_0 = arith.constant 0 : index
    %0 = vector.load %arg1[%c0, %c0_0] : memref<16x32xf32, #tpu.memory_space<vmem>>, vector<16x32xf32>
    %c0_1 = arith.constant 0 : index
    %c0_2 = arith.constant 0 : index
    %1 = vector.load %arg2[%c0_1, %c0_2] : memref<32x2xf32, #tpu.memory_space<vmem>>, vector<32x2xf32>
    %cst = arith.constant dense<0.000000e+00> : vector<16x2xf32>
    %2 = tpu.matmul %0, %1, %cst {dimension_numbers = #tpu.dot_dimension_numbers<[1], [0], [0], [1], [0, 0, 1, 1], [], []>} : vector<16x32xf32>, vector<32x2xf32>, vector<16x2xf32> -> vector<16x2xf32>
    %c0_3 = arith.constant 0 : index
    %c0_4 = arith.constant 0 : index
    %3 = vector.load %arg3[%c0_3, %c0_4] : memref<1x2xf32, #tpu.memory_space<vmem>>, vector<1x2xf32>
    %4 = vector.broadcast %3 : vector<1x2xf32> to vector<16x2xf32>
    %5 = arith.addf %2, %4 : vector<16x2xf32>
    %6 = vector.extract_strided_slice %5 {offsets = [0, 0], sizes = [16, 1], strides = [1, 1]} : vector<16x2xf32> to vector<16x1xf32>
    %c0_5 = arith.constant 0 : index
    %c0_6 = arith.constant 0 : index
    %7 = vector.load %arg4[%c0_5, %c0_6] : memref<16x1xf32, #tpu.memory_space<vmem>>, vector<16x1xf32>
    tpu.vector_store %arg4[%c0_5, %c0_6], %6 {strides = array<i32>} : memref<16x1xf32, #tpu.memory_space<vmem>>, vector<16x1xf32>,
    %8 = vector.extract_strided_slice %5 {offsets = [0, 1], sizes = [16, 1], strides = [1, 1]} : vector<16x2xf32> to vector<16x1xf32>
    %c0_7 = arith.constant 0 : index
    %c0_8 = arith.constant 0 : index
    %9 = vector.load %arg5[%c0_7, %c0_8] : memref<16x1xf32, #tpu.memory_space<vmem>>, vector<16x1xf32>
    tpu.vector_store %arg5[%c0_7, %c0_8], %8 {strides = array<i32>} : memref<16x1xf32, #tpu.memory_space<vmem>>, vector<16x1xf32>,
    return
  }
  func.func @transform_0(%arg0: i32) -> (i32, i32) {
    %c0_i32 = arith.constant 0 : i32
    %c0_i32_0 = arith.constant 0 : i32
    return %arg0, %c0_i32 : i32, i32
  }
  func.func @transform_1(%arg0: i32) -> (i32, i32) {
    %c0_i32 = arith.constant 0 : i32
    %c0_i32_0 = arith.constant 0 : i32
    %c0_i32_1 = arith.constant 0 : i32
    return %c0_i32, %c0_i32_0 : i32, i32
  }
  func.func @transform_2(%arg0: i32) -> (i32, i32) {
    %c0_i32 = arith.constant 0 : i32
    %c0_i32_0 = arith.constant 0 : i32
    %c0_i32_1 = arith.constant 0 : i32
    return %c0_i32, %c0_i32_0 : i32, i32
  }
  func.func @transform_3(%arg0: i32) -> (i32, i32) {
    %c0_i32 = arith.constant 0 : i32
    %c0_i32_0 = arith.constant 0 : i32
    return %arg0, %c0_i32 : i32, i32
  }
  func.func @transform_4(%arg0: i32) -> (i32, i32) {
    %c0_i32 = arith.constant 0 : i32
    %c0_i32_0 = arith.constant 0 : i32
    return %arg0, %c0_i32 : i32, i32
  }
}

</mosaic_0001>

<llo_original>
// kernel: tpu_custom_call.1
$region0: #{tpu_custom_call.1}
  #allocation0 [shape = 'u32[]', space=smem, size = 0x4, offset = 0x4, fixed_abs, tag = 'smem constant byte address 0x4 - core index']
  #allocation1 [shape = 'u32[144,128]{1,0:T(1,128)}', space=vmem, size = 0x12000, scoped, tag = 'internal scratch']
  %s0 = inlined_call_operand.vmem [shape: f32[16,32], index: 0, kind: input, shape index: {}]
  %s1 = inlined_call_operand.vmem [shape: f32[32,2], index: 1, kind: input, shape index: {}]
  %s2 = inlined_call_operand.vmem [shape: f32[1,2], index: 2, kind: input, shape index: {}]
  %s3 = inlined_call_operand.vmem [shape: f32[16,1], index: 3, kind: output, shape index: {0}]
  %s4 = inlined_call_operand.vmem [shape: f32[16,1], index: 4, kind: output, shape index: {1}]
  %5 = xla_tuple %s3, %s4
  %s6 = sld [smem:[#allocation0]]
  $region30: #{tpu_custom_call.1} parent=0
    _
  %s8 = ssub.s32 1, %s6
  %s9 = scalar_select 0, %s8, %s6
  // Predicated region
  $region2: #{tpu_custom_call.1} parent=0 // pred_check
    _
  $region3: #{tpu_custom_call.1} parent=0 // pred_check_branch
    %11 = sbr.rel (0) target = $region5
  $region4: #{tpu_custom_call.1} parent=0 // pred_region
    _
  $region5: #{tpu_custom_call.1} parent=0 // pred_fallthru
    _
  // Predicated region
  $region6: #{tpu_custom_call.1} parent=0 // pred_check
    _
  $region7: #{tpu_custom_call.1} parent=0 // pred_check_branch
    %13 = sbr.rel (0) target = $region9
  $region8: #{tpu_custom_call.1} parent=0 // pred_region
    _
  $region9: #{tpu_custom_call.1} parent=0 // pred_fallthru
    _
  // Predicated region
  $region10: #{tpu_custom_call.1} parent=0 // pred_check
    _
  $region11: #{tpu_custom_call.1} parent=0 // pred_check_branch
    %15 = sbr.rel (0) target = $region13
  $region12: #{tpu_custom_call.1} parent=0 // pred_region
    _
  $region13: #{tpu_custom_call.1} parent=0 // pred_fallthru
    _
  %v16 = vld [vmem:[%s0] sm:$0xff]
  %v17 = vld [vmem:[%s0 + $0x8] sm:$0xff]
  %v18 = vld [vmem:[%s1] sm:$0xff]
  %v19 = vld [vmem:[%s1 + $0x8] sm:$0xff]
  %v20 = vld [vmem:[%s1 + $0x10] sm:$0xff]
  %v21 = vld [vmem:[%s1 + $0x18] sm:$0xff]
  %v22 = vld [vmem:[%s2] sm:$0x1]
  %v24 = vlaneseq
  %v25 = vshrl.u32 %v24, 7
  %v26 = vsub.s32 0, %v25
  %v27 = vrot.slane %v22, %v26
  %vm29 = vcmask 261120
  %v31 = vsel %vm29, %v16, 0
  %v34 = vsel %vm29, %v17, 0
  %36 = vmatprep.subr.mxu0 0.0
  %37 = vmatpush1.msra.mxu0 %v18
  %38 = vmatprep.subr.mxu0 0.0
  %39 = vmatpush1.msra.mxu0 %v19
  %40 = vmatprep.subr.mxu0 0.0
  %41 = vmatpush1.msra.mxu0 %v20
  %42 = vmatprep.subr.mxu0 0.0
  %43 = vmatpush1.msra.mxu0 %v21
  %44 = vmatprep.subr.mxu0 0.0
  %45 = vmatpush1.msra.mxu0 0.0
  %46 = vmatprep.subr.mxu0 0.0
  %47 = vmatpush1.msra.mxu0 0.0
  %48 = vmatprep.subr.mxu0 0.0
  %49 = vmatpush1.msra.mxu0 0.0
  %50 = vmatprep.subr.mxu0 0.0
  %51 = vmatpush1.msra.mxu0 0.0
  %52 = vmatprep.subr.mxu0 0.0
  %53 = vmatpush1.msra.mxu0 0.0
  %54 = vmatprep.subr.mxu0 0.0
  %55 = vmatpush1.msra.mxu0 0.0
  %56 = vmatprep.subr.mxu0 0.0
  %57 = vmatpush1.msra.mxu0 0.0
  %58 = vmatprep.subr.mxu0 0.0
  %59 = vmatpush1.msra.mxu0 0.0
  %60 = vmatprep.subr.mxu0 0.0
  %61 = vmatpush1.msra.mxu0 0.0
  %62 = vmatprep.subr.mxu0 0.0
  %63 = vmatpush1.msra.mxu0 0.0
  %64 = vmatprep.subr.mxu0 0.0
  %65 = vmatpush1.msra.mxu0 0.0
  %66 = vmatprep.subr.mxu0 0.0
  %67 = vmatpush1.msra.mxu0 0.0
  %68 = vmatprep.subr.mxu0 0.0
  %69 = vmatpush1.msra.mxu0 0.0
  %70 = vmatprep.subr.mxu0 0.0
  %71 = vmatpush1.msra.mxu0 0.0
  %72 = vmatprep.subr.mxu0 0.0
  %73 = vmatpush1.msra.mxu0 0.0
  %74 = vmatprep.subr.mxu0 0.0
  %75 = vmatpush1.msra.mxu0 0.0
  %76 = vmatprep.subr.mxu0 0.0
  %77 = vmatpush1.msra.mxu0 0.0
  %78 = vmatprep.subr.mxu0 0.0
  %79 = vmatpush1.msra.mxu0 0.0
  %80 = vmatprep.subr.mxu0 0.0
  %81 = vmatpush1.msra.mxu0 0.0
  %82 = vmatprep.subr.mxu0 0.0
  %83 = vmatpush1.msra.mxu0 0.0
  %84 = vmatprep.subr.mxu0 0.0
  %85 = vmatpush1.msra.mxu0 0.0
  %86 = vmatprep.subr.mxu0 0.0
  %87 = vmatpush1.msra.mxu0 0.0
  %88 = vmatprep.subr.mxu0 0.0
  %89 = vmatpush1.msra.mxu0 0.0
  %90 = vmatprep.subr.mxu0 0.0
  %91 = vmatpush1.msra.mxu0 0.0
  %92 = vmatprep.subr.mxu0 0.0
  %93 = vmatpush1.msra.mxu0 0.0
  %94 = vmatprep.subr.mxu0 0.0
  %95 = vmatpush1.msra.mxu0 0.0
  %96 = vmatprep.subr.mxu0 0.0
  %97 = vmatpush1.msra.mxu0 0.0
  %98 = vmatprep.subr.mxu0 0.0
  %99 = vmatpush1.msra.mxu0 0.0
  %100 = vmatprep.mubr.f32.mxu0 0.0
  %101 = vmatmul.mubr.f32.gmra.mrb[0].mxu0 %v31
  %v102 = vpop.f32.mrb[0].mxu0
  %v103 = vadd.f32 %v27, %v102
  %v104 = vpop.f32.mrb[0].mxu0
  %105 = vmatprep.mubr.f32.mxu0 0.0
  %106 = vmatmul.mubr.f32.gmra.mrb[0].mxu0 %v34
  %v107 = vpop.f32.mrb[0].mxu0
  %v108 = vadd.f32 %v27, %v107
  %v109 = vpop.f32.mrb[0].mxu0
  %110 = vdwg.mxu0
  %vm111 = vcmask 7168
  %112 = vst.msk [vmem:[%s3] sm:$0xff] %vm111, %v103
  %113 = vst.msk [vmem:[%s3 + $0x8] sm:$0xff] %vm111, %v108
  %116 = vrot.lane.b32.xlu0 %v103, 127
  %v117 = vpop.permute.xlu0 %116
  %118 = vrot.lane.b32.xlu0 %v108, 127
  %v119 = vpop.permute.xlu0 %118
  %122 = vst.msk [vmem:[%s4] sm:$0xff] %vm111, %v117
  %123 = vst.msk [vmem:[%s4 + $0x8] sm:$0xff] %vm111, %v119
  // Predicated region
  $region14: #{tpu_custom_call.1} parent=0 // pred_check
    _
  $region15: #{tpu_custom_call.1} parent=0 // pred_check_branch
    %125 = sbr.rel (0) target = $region17
  $region16: #{tpu_custom_call.1} parent=0 // pred_region
    _
  $region17: #{tpu_custom_call.1} parent=0 // pred_fallthru
    _
  // Predicated region
  $region18: #{tpu_custom_call.1} parent=0 // pred_check
    _
  $region19: #{tpu_custom_call.1} parent=0 // pred_check_branch
    %127 = sbr.rel (0) target = $region21
  $region20: #{tpu_custom_call.1} parent=0 // pred_region
    _
  $region21: #{tpu_custom_call.1} parent=0 // pred_fallthru
    _
  // Predicated region
  $region22: #{tpu_custom_call.1} parent=0 // pred_check
    _
  $region23: #{tpu_custom_call.1} parent=0 // pred_check_branch
    %129 = sbr.rel (0) target = $region25
  $region24: #{tpu_custom_call.1} parent=0 // pred_region
    _
  $region25: #{tpu_custom_call.1} parent=0 // pred_fallthru
    _
  // Predicated region
  $region26: #{tpu_custom_call.1} parent=0 // pred_check
    _
  $region27: #{tpu_custom_call.1} parent=0 // pred_check_branch
    %131 = sbr.rel (0) target = $region29
  $region28: #{tpu_custom_call.1} parent=0 // pred_region
    _
  $region29: #{tpu_custom_call.1} parent=0 // pred_fallthru
    _

</llo_original>
